<compile_context>
chip_gen: v7x
topology: tpu7x:2x2x1
jax: 0.10.0
libtpu: 0.0.40
codegen_flags: <defaults>
</compile_context>

<pallas_src>
import functools

import jax
import jax.numpy as jnp
from jax import lax
from jax.experimental import pallas as pl
from jax.experimental.pallas import tpu as pltpu


def _sdpa_kernel(*refs, inv_temperature, has_bias):
    if has_bias:
        q_ref, k_ref, v_ref, b_ref, o_ref, a_ref = refs
    else:
        q_ref, k_ref, v_ref, o_ref, a_ref = refs
        b_ref = None

    q = q_ref[...]                                  # (TQ, Dk), native dtype
    k = k_ref[...]                                  # (Lk, Dk), native dtype
    v = v_ref[...]                                  # (Lk, Dv), native dtype

    # scores = q @ k^T  ('NT' matmul: contract last dim of both operands), f32 accumulation.
    s = lax.dot_general(
        q, k, (((1,), (1,)), ((), ())), preferred_element_type=jnp.float32
    )                                               # (TQ, Lk) f32
    s = s * inv_temperature

    if has_bias:
        # bias = where(mask == 0, -1e9, 0) + pre_attn  (precomputed in wrapper, f32)
        s = s + b_ref[...]

    # numerically-stable softmax over the key axis
    m = jnp.max(s, axis=-1, keepdims=True)
    p = jnp.exp(s - m)
    denom = jnp.sum(p, axis=-1, keepdims=True)
    attn = p * pl.reciprocal(denom, approx=True)    # EUP reciprocal + VPU mul

    a_ref[...] = attn.astype(a_ref.dtype)

    # output = attn @ v  (probabilities cast to v's dtype so bf16 runs the MXU at full rate)
    out = jnp.dot(attn.astype(v.dtype), v, preferred_element_type=jnp.float32)
    o_ref[...] = out.astype(o_ref.dtype)


def _pick_tq(lq):
    """Lq tile: lane/sublane friendly, bounded so per-step VMEM stays small (v7x-safe)."""
    for tq in (256, 128):
        if lq % tq == 0:
            return tq
    return lq  # small / odd Lq: single block (full dim satisfies tiling rules)


def scaled_dot_product_attention(q, k, v, temperature, pre_attn=None, mask=None):
    """Pallas-backed ScaledDotProductAttention forward (inference: dropout = identity)."""
    B, H, Lq, Dk = q.shape
    Lk = k.shape[2]
    Dv = v.shape[-1]
    BH = B * H

    # Merge batch & heads into one grid axis (free, contiguous reshape).
    q3 = q.reshape(BH, Lq, Dk)
    k3 = k.reshape(BH, Lk, Dk)
    v3 = v.reshape(BH, Lk, Dv)

    # Fuse mask and pre_attn into a single additive bias; keep natural head-broadcast shape.
    bias = None
    if mask is not None:
        bias = jnp.where(mask == 0, jnp.float32(-1000000000.0), jnp.float32(0.0))
    if pre_attn is not None:
        pa = pre_attn.astype(jnp.float32)
        bias = pa if bias is None else bias + pa

    TQ = _pick_tq(Lq)
    grid = (BH, Lq // TQ)

    in_specs = [
        pl.BlockSpec((None, TQ, Dk), lambda bh, qi: (bh, qi, 0)),   # q tile
        pl.BlockSpec((None, Lk, Dk), lambda bh, qi: (bh, 0, 0)),    # k (full Lk, per head)
        pl.BlockSpec((None, Lk, Dv), lambda bh, qi: (bh, 0, 0)),    # v (full Lk, per head)
    ]
    operands = [q3, k3, v3]

    has_bias = bias is not None
    if has_bias:
        bshape = jnp.broadcast_shapes(bias.shape, (B, 1, Lq, Lk))
        Hb = bshape[1]  # 1 (head-broadcast) or H
        bias3 = (
            jnp.broadcast_to(bias, (B, Hb, Lq, Lk))
            .reshape(B * Hb, Lq, Lk)
            .astype(jnp.float32)
        )
        if Hb == H:
            bias_map = lambda bh, qi: (bh, qi, 0)
        else:
            bias_map = lambda bh, qi: (bh // H, qi, 0)   # do not replicate across heads
        in_specs.append(pl.BlockSpec((None, TQ, Lk), bias_map))
        operands.append(bias3)

    kernel = functools.partial(
        _sdpa_kernel,
        inv_temperature=float(1.0 / temperature),
        has_bias=has_bias,
    )

    out3, attn3 = pl.pallas_call(
        kernel,
        out_shape=(
            jax.ShapeDtypeStruct((BH, Lq, Dv), q.dtype),
            jax.ShapeDtypeStruct((BH, Lq, Lk), q.dtype),   # attn in input dtype (bf16-friendly)
        ),
        grid_spec=pltpu.PrefetchScalarGridSpec(
            num_scalar_prefetch=0,
            grid=grid,
            in_specs=in_specs,
            out_specs=[
                pl.BlockSpec((None, TQ, Dv), lambda bh, qi: (bh, qi, 0)),
                pl.BlockSpec((None, TQ, Lk), lambda bh, qi: (bh, qi, 0)),
            ],
        ),
        compiler_params=pltpu.CompilerParams(
            dimension_semantics=("parallel", "parallel"),
        ),
    )(*operands)

    return out3.reshape(B, H, Lq, Dv), attn3.reshape(B, H, Lq, Lk)


def _reference(q, k, v, temperature, pre_attn=None, mask=None):
    qf = q.astype(jnp.float32)
    kf = k.astype(jnp.float32)
    vf = v.astype(jnp.float32)
    s = jnp.einsum("bhqd,bhkd->bhqk", qf / temperature, kf)
    if mask is not None:
        s = jnp.where(mask == 0, -1000000000.0, s)
    if pre_attn is not None:
        s = s + pre_attn.astype(jnp.float32)
    attn = jax.nn.softmax(s, axis=-1)
    out = jnp.einsum("bhqk,bhkd->bhqd", attn, vf)
    return out, attn


if __name__ == "__main__":
    key = jax.random.PRNGKey(0)

    # ---- Case 1: small shapes, f32, mask (head-broadcast) + pre_attn (per-head) ----
    B, H, Lq, Lk, Dk, Dv = 2, 4, 8, 8, 32, 32
    temperature = float(Dk) ** 0.5
    kq, kk, kv, kp, km = jax.random.split(key, 5)
    q = jax.random.normal(kq, (B, H, Lq, Dk), dtype=jnp.float32)
    k = jax.random.normal(kk, (B, H, Lk, Dk), dtype=jnp.float32)
    v = jax.random.normal(kv, (B, H, Lk, Dv), dtype=jnp.float32)
    pre_attn = 0.1 * jax.random.normal(kp, (B, H, Lq, Lk), dtype=jnp.float32)
    mask = (jax.random.uniform(km, (B, 1, Lq, Lk)) > 0.2).astype(jnp.int32)

    out, attn = scaled_dot_product_attention(q, k, v, temperature, pre_attn=pre_attn, mask=mask)
    jax.block_until_ready((out, attn))
    out_ref, attn_ref = _reference(q, k, v, temperature, pre_attn=pre_attn, mask=mask)
    assert jnp.allclose(out, out_ref, atol=5e-3, rtol=5e-3)
    assert jnp.allclose(attn, attn_ref, atol=5e-3, rtol=5e-3)

    # ---- Case 2: no mask / pre_attn -> bias-free kernel variant (no L^2 input DMA) ----
    out2, attn2 = scaled_dot_product_attention(q, k, v, temperature)
    jax.block_until_ready((out2, attn2))
    out2_ref, attn2_ref = _reference(q, k, v, temperature)
    assert jnp.allclose(out2, out2_ref, atol=5e-3, rtol=5e-3)
    assert jnp.allclose(attn2, attn2_ref, atol=5e-3, rtol=5e-3)

    # ---- Case 3: lane-dense bf16 shapes, mask only (kept at (B,1,Lq,Lk)), multiple Lq tiles ----
    B3, H3, Lq3, Lk3, D3 = 2, 2, 512, 256, 64
    temp3 = float(D3) ** 0.5
    kq3, kk3, kv3, km3 = jax.random.split(jax.random.PRNGKey(1), 4)
    q3 = jax.random.normal(kq3, (B3, H3, Lq3, D3), dtype=jnp.float32).astype(jnp.bfloat16)
    k3 = jax.random.normal(kk3, (B3, H3, Lk3, D3), dtype=jnp.float32).astype(jnp.bfloat16)
    v3 = jax.random.normal(kv3, (B3, H3, Lk3, D3), dtype=jnp.float32).astype(jnp.bfloat16)
    mask3 = (jax.random.uniform(km3, (B3, 1, Lq3, Lk3)) > 0.1).astype(jnp.int32)

    out3, attn3 = scaled_dot_product_attention(q3, k3, v3, temp3, mask=mask3)
    jax.block_until_ready((out3, attn3))
    out3_ref, attn3_ref = _reference(q3, k3, v3, temp3, mask=mask3)
    assert jnp.allclose(out3.astype(jnp.float32), out3_ref, atol=5e-2, rtol=5e-2)
    assert jnp.allclose(attn3.astype(jnp.float32), attn3_ref, atol=5e-2, rtol=5e-2)

    print("KERNEL_OK")
</pallas_src>

<mosaic_0001>
module attributes {stable_mosaic.version = 11 : i64} {
  func.func @_sdpa_kernel(%arg0: i32, %arg1: i32, %arg2: memref<1x8x32xf32, #tpu.memory_space<vmem>>, %arg3: memref<1x8x32xf32, #tpu.memory_space<vmem>>, %arg4: memref<1x8x32xf32, #tpu.memory_space<vmem>>, %arg5: memref<1x8x8xf32, #tpu.memory_space<vmem>>, %arg6: memref<1x8x32xf32, #tpu.memory_space<vmem>>, %arg7: memref<1x8x8xf32, #tpu.memory_space<vmem>>) attributes {dimension_semantics = [#tpu.dimension_semantics<parallel>, #tpu.dimension_semantics<parallel>], iteration_bounds = array<i64: 8, 1>, scalar_prefetch = 0 : i64, scratch_operands = 0 : i64, tpu.core_type = #tpu.core_type<tc>, window_params = [{transform_indices = @transform_0, window_bounds = array<i64: 1, 8, 32>}, {transform_indices = @transform_1, window_bounds = array<i64: 1, 8, 32>}, {transform_indices = @transform_2, window_bounds = array<i64: 1, 8, 32>}, {transform_indices = @transform_3, window_bounds = array<i64: 1, 8, 8>}, {transform_indices = @transform_4, window_bounds = array<i64: 1, 8, 32>}, {transform_indices = @transform_5, window_bounds = array<i64: 1, 8, 8>}]} {
    %c0 = arith.constant 0 : index
    %c0_0 = arith.constant 0 : index
    %c0_1 = arith.constant 0 : index
    %0 = vector.load %arg2[%c0, %c0_0, %c0_1] : memref<1x8x32xf32, #tpu.memory_space<vmem>>, vector<1x8x32xf32>
    %1 = vector.shape_cast %0 : vector<1x8x32xf32> to vector<8x32xf32>
    %c0_2 = arith.constant 0 : index
    %c0_3 = arith.constant 0 : index
    %c0_4 = arith.constant 0 : index
    %2 = vector.load %arg3[%c0_2, %c0_3, %c0_4] : memref<1x8x32xf32, #tpu.memory_space<vmem>>, vector<1x8x32xf32>
    %3 = vector.shape_cast %2 : vector<1x8x32xf32> to vector<8x32xf32>
    %c0_5 = arith.constant 0 : index
    %c0_6 = arith.constant 0 : index
    %c0_7 = arith.constant 0 : index
    %4 = vector.load %arg4[%c0_5, %c0_6, %c0_7] : memref<1x8x32xf32, #tpu.memory_space<vmem>>, vector<1x8x32xf32>
    %5 = vector.shape_cast %4 : vector<1x8x32xf32> to vector<8x32xf32>
    %cst = arith.constant dense<0.000000e+00> : vector<8x8xf32>
    %6 = tpu.matmul %1, %3, %cst {dimension_numbers = #tpu.dot_dimension_numbers<[1], [1], [0], [0], [0, 0, 1, 0], [], []>} : vector<8x32xf32>, vector<8x32xf32>, vector<8x8xf32> -> vector<8x8xf32>
    %cst_8 = arith.constant 0.176776692 : f32
    %7 = vector.broadcast %cst_8 : f32 to vector<8x8xf32>
    %8 = arith.mulf %6, %7 : vector<8x8xf32>
    %c0_9 = arith.constant 0 : index
    %c0_10 = arith.constant 0 : index
    %c0_11 = arith.constant 0 : index
    %9 = vector.load %arg5[%c0_9, %c0_10, %c0_11] : memref<1x8x8xf32, #tpu.memory_space<vmem>>, vector<1x8x8xf32>
    %10 = vector.shape_cast %9 : vector<1x8x8xf32> to vector<8x8xf32>
    %11 = arith.addf %8, %10 : vector<8x8xf32>
    %cst_12 = arith.constant dense<0xFF800000> : vector<8xf32>
    %12 = vector.multi_reduction <maximumf>, %11, %cst_12 [1] : vector<8x8xf32> to vector<8xf32>
    %13 = vector.shape_cast %12 : vector<8xf32> to vector<8x1xf32>
    %14 = vector.broadcast %13 : vector<8x1xf32> to vector<8x8xf32>
    %15 = arith.subf %11, %14 : vector<8x8xf32>
    %16 = math.exp %15 : vector<8x8xf32>
    %cst_13 = arith.constant dense<0.000000e+00> : vector<8xf32>
    %17 = vector.multi_reduction <add>, %16, %cst_13 [1] : vector<8x8xf32> to vector<8xf32>
    %18 = vector.shape_cast %17 : vector<8xf32> to vector<8x1xf32>
    %19 = tpu.reciprocal %18 {approx = true} : vector<8x1xf32> -> vector<8x1xf32>
    %20 = vector.broadcast %19 : vector<8x1xf32> to vector<8x8xf32>
    %21 = arith.mulf %16, %20 : vector<8x8xf32>
    %c0_14 = arith.constant 0 : index
    %c0_15 = arith.constant 0 : index
    %c0_16 = arith.constant 0 : index
    %22 = vector.load %arg7[%c0_14, %c0_15, %c0_16] : memref<1x8x8xf32, #tpu.memory_space<vmem>>, vector<1x8x8xf32>
    %23 = vector.shape_cast %22 : vector<1x8x8xf32> to vector<8x8xf32>
    %24 = vector.shape_cast %21 : vector<8x8xf32> to vector<1x8x8xf32>
    tpu.vector_store %arg7[%c0_14, %c0_15, %c0_16], %24 {strides = array<i32>} : memref<1x8x8xf32, #tpu.memory_space<vmem>>, vector<1x8x8xf32>,
    %cst_17 = arith.constant dense<0.000000e+00> : vector<8x32xf32>
    %25 = tpu.matmul %21, %5, %cst_17 {dimension_numbers = #tpu.dot_dimension_numbers<[1], [0], [0], [1], [0, 0, 1, 1], [], []>} : vector<8x8xf32>, vector<8x32xf32>, vector<8x32xf32> -> vector<8x32xf32>
    %c0_18 = arith.constant 0 : index
    %c0_19 = arith.constant 0 : index
    %c0_20 = arith.constant 0 : index
    %26 = vector.load %arg6[%c0_18, %c0_19, %c0_20] : memref<1x8x32xf32, #tpu.memory_space<vmem>>, vector<1x8x32xf32>
    %27 = vector.shape_cast %26 : vector<1x8x32xf32> to vector<8x32xf32>
    %28 = vector.shape_cast %25 : vector<8x32xf32> to vector<1x8x32xf32>
    tpu.vector_store %arg6[%c0_18, %c0_19, %c0_20], %28 {strides = array<i32>} : memref<1x8x32xf32, #tpu.memory_space<vmem>>, vector<1x8x32xf32>,
    return
  }
  func.func @transform_0(%arg0: i32, %arg1: i32) -> (i32, i32, i32) {
    %c0_i32 = arith.constant 0 : i32
    %c0_i32_0 = arith.constant 0 : i32
    return %arg0, %arg1, %c0_i32 : i32, i32, i32
  }
  func.func @transform_1(%arg0: i32, %arg1: i32) -> (i32, i32, i32) {
    %c0_i32 = arith.constant 0 : i32
    %c0_i32_0 = arith.constant 0 : i32
    %c0_i32_1 = arith.constant 0 : i32
    return %arg0, %c0_i32, %c0_i32_0 : i32, i32, i32
  }
  func.func @transform_2(%arg0: i32, %arg1: i32) -> (i32, i32, i32) {
    %c0_i32 = arith.constant 0 : i32
    %c0_i32_0 = arith.constant 0 : i32
    %c0_i32_1 = arith.constant 0 : i32
    return %arg0, %c0_i32, %c0_i32_0 : i32, i32, i32
  }
  func.func @transform_3(%arg0: i32, %arg1: i32) -> (i32, i32, i32) {
    %c0_i32 = arith.constant 0 : i32
    %c0_i32_0 = arith.constant 0 : i32
    return %arg0, %arg1, %c0_i32 : i32, i32, i32
  }
  func.func @transform_4(%arg0: i32, %arg1: i32) -> (i32, i32, i32) {
    %c0_i32 = arith.constant 0 : i32
    %c0_i32_0 = arith.constant 0 : i32
    return %arg0, %arg1, %c0_i32 : i32, i32, i32
  }
  func.func @transform_5(%arg0: i32, %arg1: i32) -> (i32, i32, i32) {
    %c0_i32 = arith.constant 0 : i32
    %c0_i32_0 = arith.constant 0 : i32
    return %arg0, %arg1, %c0_i32 : i32, i32, i32
  }
}

</mosaic_0001>

<llo_original>
// kernel: tpu_custom_call.1
$region0: #{tpu_custom_call.1}
  #allocation0 [shape = 'u32[]', space=smem, size = 0x4, offset = 0x4, fixed_abs, tag = 'smem constant byte address 0x4 - core index']
  #allocation1 [shape = 'u32[144,128]{1,0:T(1,128)}', space=vmem, size = 0x12000, scoped, tag = 'internal scratch']
  %s0 = inlined_call_operand.hbm [shape: f32[8,8,32], index: 0, kind: input, shape index: {}]
  %s1 = inlined_call_operand.hbm [shape: f32[8,8,32], index: 1, kind: input, shape index: {}]
  %s2 = inlined_call_operand.hbm [shape: f32[8,8,32], index: 2, kind: input, shape index: {}]
  %s3 = inlined_call_operand.hbm [shape: f32[8,8,8], index: 3, kind: input, shape index: {}]
  %s4 = inlined_call_operand.hbm [shape: f32[8,8,32], index: 4, kind: output, shape index: {0}]
  %s5 = inlined_call_operand.hbm [shape: f32[8,8,8], index: 5, kind: output, shape index: {1}]
  %6 = xla_tuple %s4, %s5
  %s7 = sld [smem:[#allocation0]]
  $region73: #{tpu_custom_call.1} parent=0
    _
  %s9 = ssub.s32 1, %s7
  %s10 = scalar_select 0, %s9, %s7
  $region1: #{tpu_custom_call.1} parent=0
    #allocation2 [shape = 'u8[8192]{0}', space=vmem, size = 0x2000, scoped, tag = 'input window, operand 0']
    #allocation3 [shape = 's32[2]{0}', space=sflag, size = 0x8, scoped, tag = 'scoped memory for tpu_custom_call.1']
    #allocation4 [shape = 's32[2]{0}', space=sflag, size = 0x8, scoped, tag = 'scoped memory for tpu_custom_call.1']
    #allocation5 [shape = 'u8[8192]{0}', space=vmem, size = 0x2000, scoped, tag = 'input window, operand 1']
    #allocation6 [shape = 's32[2]{0}', space=sflag, size = 0x8, scoped, tag = 'scoped memory for tpu_custom_call.1']
    #allocation7 [shape = 'u8[8192]{0}', space=vmem, size = 0x2000, scoped, tag = 'input window, operand 2']
    #allocation8 [shape = 'u8[8192]{0}', space=vmem, size = 0x2000, scoped, tag = 'input window, operand 3']
    #allocation9 [shape = 's32[2]{0}', space=sflag, size = 0x8, scoped, tag = 'scoped memory for tpu_custom_call.1']
    #allocation10 [shape = 'u8[8192]{0}', space=vmem, size = 0x2000, scoped, tag = 'output window, operand 0']
    #allocation11 [shape = 'u8[8192]{0}', space=vmem, size = 0x2000, scoped, tag = 'output window, operand 1']
    #allocation12 [shape = 's32[2]{0}', space=sflag, size = 0x8, scoped, tag = 'scoped memory for tpu_custom_call.1']
    %11 = vsyncpa [#allocation3], 0
    %s12 = scalar_lea.sflag [#allocation3], 1
    %13 = vsyncpa %s12, 0
    %14 = vsyncpa [#allocation6], 0
    %s15 = scalar_lea.sflag [#allocation6], 1
    %16 = vsyncpa %s15, 0
    %17 = vsyncpa [#allocation9], 0
    %s18 = scalar_lea.sflag [#allocation9], 1
    %19 = vsyncpa %s18, 0
    %20 = vsyncpa [#allocation4], 0
    %s21 = scalar_lea.sflag [#allocation4], 1
    %22 = vsyncpa %s21, 0
    %23 = vsyncpa [#allocation12], 0
    %s24 = scalar_lea.sflag [#allocation12], 1
    %25 = vsyncpa %s24, 0
    loop: start=0, step=1, limit=10
    $region2: #{tpu_custom_call.1} parent=1 // loop_pre_header
      _
    $region3: #{tpu_custom_call.1} parent=1 // loop_header
      %s27 = sphi 0, %s31
      %p28 = scmp.ge.s32.totalorder %s27, 10
      %s34 = sphi 0, %s46
      %s35 = sphi 0, %s42
      %s36 = sphi 0, %s34
      %s37 = sphi 0, %s35
      %s38 = sphi 0, %s36
      %s39 = sphi 0, %s37
      %s51 = sphi 0, %s53
      %s54 = sphi 0, %s51
      %s55 = sphi 0, %s54
      %s71 = sphi 0, %s55
      %s77 = sphi 0, %s79
      %s80 = sphi 0, %s77
      %s81 = sphi 0, %s80
      %s97 = sphi 0, %s81
      %s103 = sphi 0, %s105
      %s106 = sphi 0, %s103
      %s107 = sphi 0, %s106
      %s123 = sphi 0, %s107
      %s131 = sphi 0, %s133
      %s134 = sphi 0, %s131
      %s135 = sphi 0, %s134
      %s151 = sphi 0, %s135
      %s159 = sphi 0, %s161
      %s162 = sphi 0, %s159
      %s163 = sphi 0, %s162
      %s179 = sphi 0, %s163
      %s187 = sphi 0, %s189
      %s190 = sphi 0, %s187
      %s191 = sphi 0, %s190
      %s207 = sphi 0, %s191
    $region4: #{tpu_custom_call.1} parent=1 // loop_header_branch
      %30 = sbr.rel (%p28) target = $region8
    $region5: #{tpu_custom_call.1} parent=1 // loop_body
      %s32 = ssub.s32 %s27, 1
      %s33 = ssub.s32 %s27, 2
      %s40 = sadd.s32 1, %s35
      %p41 = scmp.ge.s32.totalorder %s40, 1
      %s42 = scalar_select %p41, 0, %s40
      %s43 = sadd.s32 1, %s34
      %s44 = scalar_select %p41, %s43, %s34
      %p45 = scmp.ge.s32.totalorder %s44, 8
      %s46 = scalar_select %p45, 0, %s44
      %s47 = ssub.s32 %s34, %s46
      %s48 = ssub.s32 %s35, %s42
      %s49 = sor.u32 %s47, %s48
      %p50 = scmp.eq.s32.totalorder %s49, 0
      %s52 = sadd.s32 %s51, 1
      %s53 = scalar_select %p50, %s51, %s52
      %p56 = pneg %p50
      %p57 = scmp.eq.s32.totalorder %s27, 7
      %p58 = por %p56, %p57
      %p59 = scmp.ne.s32.totalorder %s51, %s54
      %p60 = scmp.eq.s32.totalorder %s27, 0
      %p61 = por %p59, %p60
      %p62 = scmp.ne.s32.totalorder %s51, %s54
      %p63 = scmp.eq.s32.totalorder %s32, 7
      %p64 = por %p62, %p63
      %p65 = scmp.ne.s32.totalorder %s54, %s55
      %p66 = scmp.eq.s32.totalorder %s32, 0
      %p67 = por %p65, %p66
      %p68 = scmp.ne.s32.totalorder %s54, %s55
      %p69 = scmp.eq.s32.totalorder %s33, 7
      %p70 = por %p68, %p69
      %p72 = scmp.ne.s32.totalorder %s55, %s71
      %p73 = scmp.eq.s32.totalorder %s33, 0
      %p74 = por %p72, %p73
      %s75 = ssub.s32 %s34, %s46
      %p76 = scmp.eq.s32.totalorder %s75, 0
      %s78 = sadd.s32 %s77, 1
      %s79 = scalar_select %p76, %s77, %s78
      %p82 = pneg %p76
      %p83 = scmp.eq.s32.totalorder %s27, 7
      %p84 = por %p82, %p83
      %p85 = scmp.ne.s32.totalorder %s77, %s80
      %p86 = scmp.eq.s32.totalorder %s27, 0
      %p87 = por %p85, %p86
      %p88 = scmp.ne.s32.totalorder %s77, %s80
      %p89 = scmp.eq.s32.totalorder %s32, 7
      %p90 = por %p88, %p89
      %p91 = scmp.ne.s32.totalorder %s80, %s81
      %p92 = scmp.eq.s32.totalorder %s32, 0
      %p93 = por %p91, %p92
      %p94 = scmp.ne.s32.totalorder %s80, %s81
      %p95 = scmp.eq.s32.totalorder %s33, 7
      %p96 = por %p94, %p95
      %p98 = scmp.ne.s32.totalorder %s81, %s97
      %p99 = scmp.eq.s32.totalorder %s33, 0
      %p100 = por %p98, %p99
      %s101 = ssub.s32 %s34, %s46
      %p102 = scmp.eq.s32.totalorder %s101, 0
      %s104 = sadd.s32 %s103, 1
      %s105 = scalar_select %p102, %s103, %s104
      %p108 = pneg %p102
      %p109 = scmp.eq.s32.totalorder %s27, 7
      %p110 = por %p108, %p109
      %p111 = scmp.ne.s32.totalorder %s103, %s106
      %p112 = scmp.eq.s32.totalorder %s27, 0
      %p113 = por %p111, %p112
      %p114 = scmp.ne.s32.totalorder %s103, %s106
      %p115 = scmp.eq.s32.totalorder %s32, 7
      %p116 = por %p114, %p115
      %p117 = scmp.ne.s32.totalorder %s106, %s107
      %p118 = scmp.eq.s32.totalorder %s32, 0
      %p119 = por %p117, %p118
      %p120 = scmp.ne.s32.totalorder %s106, %s107
      %p121 = scmp.eq.s32.totalorder %s33, 7
      %p122 = por %p120, %p121
      %p124 = scmp.ne.s32.totalorder %s107, %s123
      %p125 = scmp.eq.s32.totalorder %s33, 0
      %p126 = por %p124, %p125
      %s127 = ssub.s32 %s34, %s46
      %s128 = ssub.s32 %s35, %s42
      %s129 = sor.u32 %s127, %s128
      %p130 = scmp.eq.s32.totalorder %s129, 0
      %s132 = sadd.s32 %s131, 1
      %s133 = scalar_select %p130, %s131, %s132
      %p136 = pneg %p130
      %p137 = scmp.eq.s32.totalorder %s27, 7
      %p138 = por %p136, %p137
      %p139 = scmp.ne.s32.totalorder %s131, %s134
      %p140 = scmp.eq.s32.totalorder %s27, 0
      %p141 = por %p139, %p140
      %p142 = scmp.ne.s32.totalorder %s131, %s134
      %p143 = scmp.eq.s32.totalorder %s32, 7
      %p144 = por %p142, %p143
      %p145 = scmp.ne.s32.totalorder %s134, %s135
      %p146 = scmp.eq.s32.totalorder %s32, 0
      %p147 = por %p145, %p146
      %p148 = scmp.ne.s32.totalorder %s134, %s135
      %p149 = scmp.eq.s32.totalorder %s33, 7
      %p150 = por %p148, %p149
      %p152 = scmp.ne.s32.totalorder %s135, %s151
      %p153 = scmp.eq.s32.totalorder %s33, 0
      %p154 = por %p152, %p153
      %s155 = ssub.s32 %s34, %s46
      %s156 = ssub.s32 %s35, %s42
      %s157 = sor.u32 %s155, %s156
      %p158 = scmp.eq.s32.totalorder %s157, 0
      %s160 = sadd.s32 %s159, 1
      %s161 = scalar_select %p158, %s159, %s160
      %p164 = pneg %p158
      %p165 = scmp.eq.s32.totalorder %s27, 7
      %p166 = por %p164, %p165
      %p167 = scmp.ne.s32.totalorder %s159, %s162
      %p168 = scmp.eq.s32.totalorder %s27, 0
      %p169 = por %p167, %p168
      %p170 = scmp.ne.s32.totalorder %s159, %s162
      %p171 = scmp.eq.s32.totalorder %s32, 7
      %p172 = por %p170, %p171
      %p173 = scmp.ne.s32.totalorder %s162, %s163
      %p174 = scmp.eq.s32.totalorder %s32, 0
      %p175 = por %p173, %p174
      %p176 = scmp.ne.s32.totalorder %s162, %s163
      %p177 = scmp.eq.s32.totalorder %s33, 7
      %p178 = por %p176, %p177
      %p180 = scmp.ne.s32.totalorder %s163, %s179
      %p181 = scmp.eq.s32.totalorder %s33, 0
      %p182 = por %p180, %p181
      %s183 = ssub.s32 %s34, %s46
      %s184 = ssub.s32 %s35, %s42
      %s185 = sor.u32 %s183, %s184
      %p186 = scmp.eq.s32.totalorder %s185, 0
      %s188 = sadd.s32 %s187, 1
      %s189 = scalar_select %p186, %s187, %s188
      %p192 = pneg %p186
      %p193 = scmp.eq.s32.totalorder %s27, 7
      %p194 = por %p192, %p193
      %p195 = scmp.ne.s32.totalorder %s187, %s190
      %p196 = scmp.eq.s32.totalorder %s27, 0
      %p197 = por %p195, %p196
      %p198 = scmp.ne.s32.totalorder %s187, %s190
      %p199 = scmp.eq.s32.totalorder %s32, 7
      %p200 = por %p198, %p199
      %p201 = scmp.ne.s32.totalorder %s190, %s191
      %p202 = scmp.eq.s32.totalorder %s32, 0
      %p203 = por %p201, %p202
      %p204 = scmp.ne.s32.totalorder %s190, %s191
      %p205 = scmp.eq.s32.totalorder %s33, 7
      %p206 = por %p204, %p205
      %p208 = scmp.ne.s32.totalorder %s191, %s207
      %p209 = scmp.eq.s32.totalorder %s33, 0
      %p210 = por %p208, %p209
      %p211 = scmp.le.s32.totalorder 1, %s27
      %p212 = scmp.lt.s32.totalorder %s27, 9
      %p213 = pnand %p211, %p212
      %p214 = pneg %p213
      // Predicated region
      $region9: #{tpu_custom_call.1} parent=5 // pred_check
        _
      $region10: #{tpu_custom_call.1} parent=5 // pred_check_branch
        %216 = sbr.rel (%p213) target = $region12
      $region11: #{tpu_custom_call.1} parent=5 // pred_region
        %s217 = ssub.s32 %s27, 1
      $region12: #{tpu_custom_call.1} parent=5 // pred_fallthru
        _
      %p218 = scmp.lt.s32.totalorder %s27, 8
      // Predicated region
      $region13: #{tpu_custom_call.1} parent=5 // pred_check
        %p219 = pneg %p218
      $region14: #{tpu_custom_call.1} parent=5 // pred_check_branch
        %221 = sbr.rel (%p219) target = $region16
      $region15: #{tpu_custom_call.1} parent=5 // pred_region
        // Predicated region
        $region17: #{tpu_custom_call.1} parent=15 // pred_check
          %p222 = pneg %p61
        $region18: #{tpu_custom_call.1} parent=15 // pred_check_branch
          %224 = sbr.rel (%p222) target = $region20
        $region19: #{tpu_custom_call.1} parent=15 // pred_region
          %s225 = sand.u32 %s51, 1
          %s226 = scalar_lea.sflag [#allocation3], %s225
          %s227 = sand.u32 %s51, 1
          %s228 = smul.addr %s227, 8
          %s229 = scalar_lea.vmem [#allocation2], %s228
          %s231 = ssub.s32 128, 128
          %232 = vsyncadd %s226, %s231
          %s233 = sadd.s32 %s35, %s34
          %s234 = smul.addr %s233, 128
          %s235 = scalar_lea.hbm %s0, %s234
          %s237 = sshll.u32 %s229, 4
          %s238 = int_to_ptr.vmem [resolvable:$true] %s237
          %240 = dma.hbm_to_vmem [thread:$0]  %s235, 128, %s238, %s226
        $region20: #{tpu_custom_call.1} parent=15 // pred_fallthru
          _
        // Predicated region
        $region21: #{tpu_custom_call.1} parent=15 // pred_check
          %p241 = pneg %p87
        $region22: #{tpu_custom_call.1} parent=15 // pred_check_branch
          %243 = sbr.rel (%p241) target = $region24
        $region23: #{tpu_custom_call.1} parent=15 // pred_region
          %s244 = sand.u32 %s27, 1
          %s245 = scalar_lea.sflag [#allocation6], %s244
          %s246 = sand.u32 %s77, 1
          %s247 = smul.addr %s246, 8
          %s248 = scalar_lea.vmem [#allocation5], %s247
          %s250 = ssub.s32 128, 128
          %251 = vsyncadd %s245, %s250
          %s252 = smul.addr %s34, 128
          %s253 = scalar_lea.hbm %s1, %s252
          %s255 = sshll.u32 %s248, 4
          %s256 = int_to_ptr.vmem [resolvable:$true] %s255
          %258 = dma.hbm_to_vmem [thread:$0]  %s253, 128, %s256, %s245
        $region24: #{tpu_custom_call.1} parent=15 // pred_fallthru
          _
        // Predicated region
        $region25: #{tpu_custom_call.1} parent=15 // pred_check
          %p259 = pneg %p113
        $region26: #{tpu_custom_call.1} parent=15 // pred_check_branch
          %261 = sbr.rel (%p259) target = $region28
        $region27: #{tpu_custom_call.1} parent=15 // pred_region
          %s262 = sand.u32 %s27, 1
          %s263 = scalar_lea.sflag [#allocation6], %s262
          %s264 = sand.u32 %s103, 1
          %s265 = smul.addr %s264, 8
          %s266 = scalar_lea.vmem [#allocation7], %s265
          %s268 = ssub.s32 128, 128
          %269 = vsyncadd %s263, %s268
          %s270 = smul.addr %s34, 128
          %s271 = scalar_lea.hbm %s2, %s270
          %s273 = sshll.u32 %s266, 4
          %s274 = int_to_ptr.vmem [resolvable:$true] %s273
          %276 = dma.hbm_to_vmem [thread:$0]  %s271, 128, %s274, %s263
        $region28: #{tpu_custom_call.1} parent=15 // pred_fallthru
          _
        // Predicated region
        $region29: #{tpu_custom_call.1} parent=15 // pred_check
          %p277 = pneg %p141
        $region30: #{tpu_custom_call.1} parent=15 // pred_check_branch
          %279 = sbr.rel (%p277) target = $region32
        $region31: #{tpu_custom_call.1} parent=15 // pred_region
          %s280 = sand.u32 %s131, 1
          %s281 = scalar_lea.sflag [#allocation9], %s280
          %s282 = sand.u32 %s131, 1
          %s283 = smul.addr %s282, 8
          %s284 = scalar_lea.vmem [#allocation8], %s283
          %s286 = ssub.s32 128, 128
          %287 = vsyncadd %s281, %s286
          %s288 = sadd.s32 %s35, %s34
          %s289 = smul.addr %s288, 128
          %s290 = scalar_lea.hbm %s3, %s289
          %s292 = sshll.u32 %s284, 4
          %s293 = int_to_ptr.vmem [resolvable:$true] %s292
          %295 = dma.hbm_to_vmem [thread:$0]  %s290, 128, %s293, %s281
        $region32: #{tpu_custom_call.1} parent=15 // pred_fallthru
          _
      $region16: #{tpu_custom_call.1} parent=5 // pred_fallthru
        _
      %p296 = scmp.le.s32.totalorder 1, %s27
      %p297 = scmp.lt.s32.totalorder %s27, 9
      %p298 = pnand %p296, %p297
      %p299 = pneg %p298
      // Predicated region
      $region33: #{tpu_custom_call.1} parent=5 // pred_check
        _
      $region34: #{tpu_custom_call.1} parent=5 // pred_check_branch
        %301 = sbr.rel (%p298) target = $region36
      $region35: #{tpu_custom_call.1} parent=5 // pred_region
        %s302 = ssub.s32 %s27, 1
        %s303 = sand.u32 %s54, 1
        %s304 = scalar_lea.sflag [#allocation3], %s303
        %s305 = sand.u32 %s54, 1
        %s306 = smul.addr %s305, 8
        %s307 = scalar_lea.vmem [#allocation2], %s306
        // Predicated region
        $region37: #{tpu_custom_call.1} parent=35 // pred_check
          %p308 = pneg %p67
        $region38: #{tpu_custom_call.1} parent=35 // pred_check_branch
          %310 = sbr.rel (%p308) target = $region40
        $region39: #{tpu_custom_call.1} parent=35 // pred_region
          %311 = dma.done %s304, 128
        $region40: #{tpu_custom_call.1} parent=35 // pred_fallthru
          _
        %s312 = sand.u32 %s32, 1
        %s313 = scalar_lea.sflag [#allocation6], %s312
        %s314 = sand.u32 %s80, 1
        %s315 = smul.addr %s314, 8
        %s316 = scalar_lea.vmem [#allocation5], %s315
        // Predicated region
        $region41: #{tpu_custom_call.1} parent=35 // pred_check
          %p317 = pneg %p93
        $region42: #{tpu_custom_call.1} parent=35 // pred_check_branch
          %319 = sbr.rel (%p317) target = $region44
        $region43: #{tpu_custom_call.1} parent=35 // pred_region
          %320 = dma.done %s313, 128
        $region44: #{tpu_custom_call.1} parent=35 // pred_fallthru
          _
        %s321 = sand.u32 %s32, 1
        %s322 = scalar_lea.sflag [#allocation6], %s321
        %s323 = sand.u32 %s106, 1
        %s324 = smul.addr %s323, 8
        %s325 = scalar_lea.vmem [#allocation7], %s324
        // Predicated region
        $region45: #{tpu_custom_call.1} parent=35 // pred_check
          %p326 = pneg %p119
        $region46: #{tpu_custom_call.1} parent=35 // pred_check_branch
          %328 = sbr.rel (%p326) target = $region48
        $region47: #{tpu_custom_call.1} parent=35 // pred_region
          %329 = dma.done %s322, 128
        $region48: #{tpu_custom_call.1} parent=35 // pred_fallthru
          _
        %s330 = sand.u32 %s134, 1
        %s331 = scalar_lea.sflag [#allocation9], %s330
        %s332 = sand.u32 %s134, 1
        %s333 = smul.addr %s332, 8
        %s334 = scalar_lea.vmem [#allocation8], %s333
        // Predicated region
        $region49: #{tpu_custom_call.1} parent=35 // pred_check
          %p335 = pneg %p147
        $region50: #{tpu_custom_call.1} parent=35 // pred_check_branch
          %337 = sbr.rel (%p335) target = $region52
        $region51: #{tpu_custom_call.1} parent=35 // pred_region
          %338 = dma.done %s331, 128
        $region52: #{tpu_custom_call.1} parent=35 // pred_fallthru
          _
        %s339 = sand.u32 %s54, 1
        %s340 = scalar_lea.sflag [#allocation3], %s339
        %s341 = sand.u32 %s54, 1
        %s342 = smul.addr %s341, 8
        %s343 = scalar_lea.vmem [#allocation2], %s342
        %p344 = pneg %p67
        %p345 = pneg %p64
        %s346 = sand.u32 %s32, 1
        %s347 = scalar_lea.sflag [#allocation6], %s346
        %s348 = sand.u32 %s80, 1
        %s349 = smul.addr %s348, 8
        %s350 = scalar_lea.vmem [#allocation5], %s349
        %p351 = pneg %p93
        %p352 = pneg %p90
        %s353 = sand.u32 %s32, 1
        %s354 = scalar_lea.sflag [#allocation6], %s353
        %s355 = sand.u32 %s106, 1
        %s356 = smul.addr %s355, 8
        %s357 = scalar_lea.vmem [#allocation7], %s356
        %p358 = pneg %p119
        %p359 = pneg %p116
        %s360 = sand.u32 %s134, 1
        %s361 = scalar_lea.sflag [#allocation9], %s360
        %s362 = sand.u32 %s134, 1
        %s363 = smul.addr %s362, 8
        %s364 = scalar_lea.vmem [#allocation8], %s363
        %p365 = pneg %p147
        %p366 = pneg %p144
        %p367 = pneg %p175
        %p368 = pneg %p172
        %s369 = sand.u32 %s162, 1
        %s370 = scalar_lea.sflag [#allocation4], %s369
        %s371 = sand.u32 %s162, 1
        %s372 = smul.addr %s371, 8
        %s373 = scalar_lea.vmem [#allocation10], %s372
        %p374 = pneg %p203
        %p375 = pneg %p200
        %s376 = sand.u32 %s190, 1
        %s377 = scalar_lea.sflag [#allocation12], %s376
        %s378 = sand.u32 %s190, 1
        %s379 = smul.addr %s378, 8
        %s380 = scalar_lea.vmem [#allocation11], %s379
        %v381 = vld [vmem:[%s307] sm:$0xff]
        %v382 = vld [vmem:[%s316] sm:$0xff]
        %v383 = vld [vmem:[%s325] sm:$0xff]
        %vm384 = vcmask 261120
        %v386 = vsel %vm384, %v381, 0
        %v389 = vsel %vm384, %v382, 0
        %391 = vmatprep.subr.mxu0 0.0
        %392 = vmatpush1.xpose.msra.mxu0 %v389
        %393 = vmatprep.subr.mxu0 0.0
        %394 = vmatpush1.xpose.msra.mxu0 0.0
        %395 = vmatprep.subr.mxu0 0.0
        %396 = vmatpush1.xpose.msra.mxu0 0.0
        %397 = vmatprep.subr.mxu0 0.0
        %398 = vmatpush1.xpose.msra.mxu0 0.0
        %399 = vmatprep.subr.mxu0 0.0
        %400 = vmatpush1.xpose.msra.mxu0 0.0
        %401 = vmatprep.subr.mxu0 0.0
        %402 = vmatpush1.xpose.msra.mxu0 0.0
        %403 = vmatprep.subr.mxu0 0.0
        %404 = vmatpush1.xpose.msra.mxu0 0.0
        %405 = vmatprep.subr.mxu0 0.0
        %406 = vmatpush1.xpose.msra.mxu0 0.0
        %407 = vmatprep.subr.mxu0 0.0
        %408 = vmatpush1.xpose.msra.mxu0 0.0
        %409 = vmatprep.subr.mxu0 0.0
        %410 = vmatpush1.xpose.msra.mxu0 0.0
        %411 = vmatprep.subr.mxu0 0.0
        %412 = vmatpush1.xpose.msra.mxu0 0.0
        %413 = vmatprep.subr.mxu0 0.0
        %414 = vmatpush1.xpose.msra.mxu0 0.0
        %415 = vmatprep.subr.mxu0 0.0
        %416 = vmatpush1.xpose.msra.mxu0 0.0
        %417 = vmatprep.subr.mxu0 0.0
        %418 = vmatpush1.xpose.msra.mxu0 0.0
        %419 = vmatprep.subr.mxu0 0.0
        %420 = vmatpush1.xpose.msra.mxu0 0.0
        %421 = vmatprep.subr.mxu0 0.0
        %422 = vmatpush1.xpose.msra.mxu0 0.0
        %423 = vmatprep.subr.mxu0 0.0
        %424 = vmatpush1.xpose.msra.mxu0 0.0
        %425 = vmatprep.subr.mxu0 0.0
        %426 = vmatpush1.xpose.msra.mxu0 0.0
        %427 = vmatprep.subr.mxu0 0.0
        %428 = vmatpush1.xpose.msra.mxu0 0.0
        %429 = vmatprep.subr.mxu0 0.0
        %430 = vmatpush1.xpose.msra.mxu0 0.0
        %431 = vmatprep.subr.mxu0 0.0
        %432 = vmatpush1.xpose.msra.mxu0 0.0
        %433 = vmatprep.subr.mxu0 0.0
        %434 = vmatpush1.xpose.msra.mxu0 0.0
        %435 = vmatprep.subr.mxu0 0.0
        %436 = vmatpush1.xpose.msra.mxu0 0.0
        %437 = vmatprep.subr.mxu0 0.0
        %438 = vmatpush1.xpose.msra.mxu0 0.0
        %439 = vmatprep.subr.mxu0 0.0
        %440 = vmatpush1.xpose.msra.mxu0 0.0
        %441 = vmatprep.subr.mxu0 0.0
        %442 = vmatpush1.xpose.msra.mxu0 0.0
        %443 = vmatprep.subr.mxu0 0.0
        %444 = vmatpush1.xpose.msra.mxu0 0.0
        %445 = vmatprep.subr.mxu0 0.0
        %446 = vmatpush1.xpose.msra.mxu0 0.0
        %447 = vmatprep.subr.mxu0 0.0
        %448 = vmatpush1.xpose.msra.mxu0 0.0
        %449 = vmatprep.subr.mxu0 0.0
        %450 = vmatpush1.xpose.msra.mxu0 0.0
        %451 = vmatprep.subr.mxu0 0.0
        %452 = vmatpush1.xpose.msra.mxu0 0.0
        %453 = vmatprep.subr.mxu0 0.0
        %454 = vmatpush1.xpose.msra.mxu0 0.0
        %455 = vmatprep.mubr.f32.mxu0 0.0
        %456 = vmatmul.mubr.f32.gmra.mrb[0].mxu0 %v386
        %v457 = vpop.f32.mrb[0].mxu0
        %v458 = vadd.f32 0.0, %v457
        %v459 = vpop.f32.mrb[0].mxu0
        %460 = vdwg.mxu0
        %v461 = vmul.f32 %v458, 0.17677669
        %v462 = vld [vmem:[%s334] sm:$0xff]
        %v463 = vadd.f32 %v461, %v462
        %vm464 = vcmask 64512
        %v465 = vsel %vm464, %v463, -inf
        %466 = vmax.xlane.f32.xlu0 %v465
        %v467 = vpop.xlane.xlu0 %466
        %v468 = vsub.f32 %v463, %v467
        %v469 = vmul.f32 %v468, 1.442695
        %v470 = vpow.pop %v469
        %v471 = vsel %vm464, %v470, 0.0
        %472 = vadd.xlane.f32.xlu0 %v471
        %v473 = vpop.xlane.xlu0 %472
        %v474 = vrcp.pop %v473
        %v475 = vmul.f32 %v470, %v474
        %476 = vst.msk [vmem:[%s380] sm:$0xff] %vm464, %v475
        %v478 = vsel %vm464, %v475, 0
        %480 = vmatprep.subr.mxu0 0.0
        %481 = vmatpush1.msra.mxu0 %v383
        %482 = vmatprep.subr.mxu0 0.0
        %483 = vmatpush1.msra.mxu0 0.0
        %484 = vmatprep.subr.mxu0 0.0
        %485 = vmatpush1.msra.mxu0 0.0
        %486 = vmatprep.subr.mxu0 0.0
        %487 = vmatpush1.msra.mxu0 0.0
        %488 = vmatprep.subr.mxu0 0.0
        %489 = vmatpush1.msra.mxu0 0.0
        %490 = vmatprep.subr.mxu0 0.0
        %491 = vmatpush1.msra.mxu0 0.0
        %492 = vmatprep.subr.mxu0 0.0
        %493 = vmatpush1.msra.mxu0 0.0
        %494 = vmatprep.subr.mxu0 0.0
        %495 = vmatpush1.msra.mxu0 0.0
        %496 = vmatprep.subr.mxu0 0.0
        %497 = vmatpush1.msra.mxu0 0.0
        %498 = vmatprep.subr.mxu0 0.0
        %499 = vmatpush1.msra.mxu0 0.0
        %500 = vmatprep.subr.mxu0 0.0
        %501 = vmatpush1.msra.mxu0 0.0
        %502 = vmatprep.subr.mxu0 0.0
        %503 = vmatpush1.msra.mxu0 0.0
        %504 = vmatprep.subr.mxu0 0.0
        %505 = vmatpush1.msra.mxu0 0.0
        %506 = vmatprep.subr.mxu0 0.0
        %507 = vmatpush1.msra.mxu0 0.0
        %508 = vmatprep.subr.mxu0 0.0
        %509 = vmatpush1.msra.mxu0 0.0
        %510 = vmatprep.subr.mxu0 0.0
        %511 = vmatpush1.msra.mxu0 0.0
        %512 = vmatprep.subr.mxu0 0.0
        %513 = vmatpush1.msra.mxu0 0.0
        %514 = vmatprep.subr.mxu0 0.0
        %515 = vmatpush1.msra.mxu0 0.0
        %516 = vmatprep.subr.mxu0 0.0
        %517 = vmatpush1.msra.mxu0 0.0
        %518 = vmatprep.subr.mxu0 0.0
        %519 = vmatpush1.msra.mxu0 0.0
        %520 = vmatprep.subr.mxu0 0.0
        %521 = vmatpush1.msra.mxu0 0.0
        %522 = vmatprep.subr.mxu0 0.0
        %523 = vmatpush1.msra.mxu0 0.0
        %524 = vmatprep.subr.mxu0 0.0
        %525 = vmatpush1.msra.mxu0 0.0
        %526 = vmatprep.subr.mxu0 0.0
        %527 = vmatpush1.msra.mxu0 0.0
        %528 = vmatprep.subr.mxu0 0.0
        %529 = vmatpush1.msra.mxu0 0.0
        %530 = vmatprep.subr.mxu0 0.0
        %531 = vmatpush1.msra.mxu0 0.0
        %532 = vmatprep.subr.mxu0 0.0
        %533 = vmatpush1.msra.mxu0 0.0
        %534 = vmatprep.subr.mxu0 0.0
        %535 = vmatpush1.msra.mxu0 0.0
        %536 = vmatprep.subr.mxu0 0.0
        %537 = vmatpush1.msra.mxu0 0.0
        %538 = vmatprep.subr.mxu0 0.0
        %539 = vmatpush1.msra.mxu0 0.0
        %540 = vmatprep.subr.mxu0 0.0
        %541 = vmatpush1.msra.mxu0 0.0
        %542 = vmatprep.subr.mxu0 0.0
        %543 = vmatpush1.msra.mxu0 0.0
        %544 = vmatprep.mubr.f32.mxu0 0.0
        %545 = vmatmul.mubr.f32.gmra.mrb[0].mxu0 %v478
        %v546 = vpop.f32.mrb[0].mxu0
        %v547 = vadd.f32 0.0, %v546
        %v548 = vpop.f32.mrb[0].mxu0
        %549 = vdwg.mxu0
        %550 = vst.msk [vmem:[%s373] sm:$0xff] %vm384, %v547
        %s551 = sand.u32 %s162, 1
        %s552 = scalar_lea.sflag [#allocation4], %s551
        %s553 = sand.u32 %s162, 1
        %s554 = smul.addr %s553, 8
        %s555 = scalar_lea.vmem [#allocation10], %s554
        %s556 = sand.u32 %s190, 1
        %s557 = scalar_lea.sflag [#allocation12], %s556
        %s558 = sand.u32 %s190, 1
        %s559 = smul.addr %s558, 8
        %s560 = scalar_lea.vmem [#allocation11], %s559
        // Predicated region
        $region53: #{tpu_custom_call.1} parent=35 // pred_check
          %p561 = pneg %p172
        $region54: #{tpu_custom_call.1} parent=35 // pred_check_branch
          %563 = sbr.rel (%p561) target = $region56
        $region55: #{tpu_custom_call.1} parent=35 // pred_region
          %s565 = ssub.s32 128, 128
          %566 = vsyncadd %s552, %s565
          %s567 = sadd.s32 %s37, %s36
          %s568 = smul.addr %s567, 128
          %s569 = scalar_lea.hbm %s4, %s568
          %s571 = sshll.u32 %s555, 4
          %s572 = int_to_ptr.vmem [resolvable:$true] %s571
          %574 = dma.vmem_to_hbm [thread:$0]  %s572, 128, %s569, %s552
        $region56: #{tpu_custom_call.1} parent=35 // pred_fallthru
          _
        // Predicated region
        $region57: #{tpu_custom_call.1} parent=35 // pred_check
          %p575 = pneg %p200
        $region58: #{tpu_custom_call.1} parent=35 // pred_check_branch
          %577 = sbr.rel (%p575) target = $region60
        $region59: #{tpu_custom_call.1} parent=35 // pred_region
          %s579 = ssub.s32 128, 128
          %580 = vsyncadd %s557, %s579
          %s581 = sadd.s32 %s37, %s36
          %s582 = smul.addr %s581, 128
          %s583 = scalar_lea.hbm %s5, %s582
          %s585 = sshll.u32 %s560, 4
          %s586 = int_to_ptr.vmem [resolvable:$true] %s585
          %588 = dma.vmem_to_hbm [thread:$0]  %s586, 128, %s583, %s557
        $region60: #{tpu_custom_call.1} parent=35 // pred_fallthru
          _
      $region36: #{tpu_custom_call.1} parent=5 // pred_fallthru
        _
      %p589 = scmp.le.s32.totalorder 2, %s27
      // Predicated region
      $region61: #{tpu_custom_call.1} parent=5 // pred_check
        %p590 = pneg %p589
      $region62: #{tpu_custom_call.1} parent=5 // pred_check_branch
        %592 = sbr.rel (%p590) target = $region64
      $region63: #{tpu_custom_call.1} parent=5 // pred_region
        %s593 = ssub.s32 %s27, 2
        // Predicated region
        $region65: #{tpu_custom_call.1} parent=63 // pred_check
          %p594 = pneg %p178
        $region66: #{tpu_custom_call.1} parent=63 // pred_check_branch
          %596 = sbr.rel (%p594) target = $region68
        $region67: #{tpu_custom_call.1} parent=63 // pred_region
          %s597 = sand.u32 %s163, 1
          %s598 = scalar_lea.sflag [#allocation4], %s597
          %s599 = sand.u32 %s163, 1
          %s600 = smul.addr %s599, 8
          %s601 = scalar_lea.vmem [#allocation10], %s600
          %602 = dma.done %s598, 128
        $region68: #{tpu_custom_call.1} parent=63 // pred_fallthru
          _
        // Predicated region
        $region69: #{tpu_custom_call.1} parent=63 // pred_check
          %p603 = pneg %p206
        $region70: #{tpu_custom_call.1} parent=63 // pred_check_branch
          %605 = sbr.rel (%p603) target = $region72
        $region71: #{tpu_custom_call.1} parent=63 // pred_region
          %s606 = sand.u32 %s191, 1
          %s607 = scalar_lea.sflag [#allocation12], %s606
          %s608 = sand.u32 %s191, 1
          %s609 = smul.addr %s608, 8
          %s610 = scalar_lea.vmem [#allocation11], %s609
          %611 = dma.done %s607, 128
        $region72: #{tpu_custom_call.1} parent=63 // pred_fallthru
          _
      $region64: #{tpu_custom_call.1} parent=5 // pred_fallthru
        _
    $region6: #{tpu_custom_call.1} parent=1 // loop_footer
      %s31 = sadd.s32 1, %s27
    $region7: #{tpu_custom_call.1} parent=1 // loop_footer_branch
      %26 = sbr.rel target = $region3
    $region8: #{tpu_custom_call.1} parent=1 // loop_exit
      _
    %612 = vsyncpa [#allocation3], 1
    %s613 = scalar_lea.sflag [#allocation3], 1
    %614 = vsyncpa %s613, 1
    %615 = vsyncpa [#allocation6], 1
    %s616 = scalar_lea.sflag [#allocation6], 1
    %617 = vsyncpa %s616, 1
    %618 = vsyncpa [#allocation9], 1
    %s619 = scalar_lea.sflag [#allocation9], 1
    %620 = vsyncpa %s619, 1
    %621 = vsyncpa [#allocation4], 1
    %s622 = scalar_lea.sflag [#allocation4], 1
    %623 = vsyncpa %s622, 1
    %624 = vsyncpa [#allocation12], 1
    %s625 = scalar_lea.sflag [#allocation12], 1
    %626 = vsyncpa %s625, 1

</llo_original>
